<compile_context>
chip_gen: v7x
topology: tpu7x:2x2x1
jax: 0.10.0
libtpu: 0.0.40
codegen_flags: <defaults>
</compile_context>

<pallas_src>
import jax
import jax.numpy as jnp
from jax.experimental import pallas as pl
from jax.experimental.pallas import tpu as pltpu


def fld_kernel(ts_ref, tp_ref, w1_ref, b1_ref, w2_ref, b2_ref, out_ref):
    # ts: (bm, T)      timesteps tile
    # tp: (2, E)       row 0 = time_linear weight, row 1 = time_linear bias
    # w1: (E, L), b1: (1, L)   decoder layer 0 (bias already includes the
    #                          hoisted channel-embed mean term)
    # w2: (L, C), b2: (1, C)   decoder layer 1
    # out: (bm, C)
    ts = ts_ref[...]                                       # (bm, T)
    tp = tp_ref[...]                                       # (2, E)
    tw = tp[0:1, :]                                        # (1, E)
    tb = tp[1:2, :]                                        # (1, E)

    # learn_time: E_lin = t * w + b ; Et = E_lin + sin(E_lin)
    e_lin = ts[:, :, None] * tw[None, :, :] + tb[None, :, :]   # (bm, T, E)
    et = e_lin + jnp.sin(e_lin)                                # (bm, T, E)

    # mean pool over time (channel-embed mean is folded into b1 already)
    mean_t = jnp.mean(et, axis=1)                              # (bm, E)

    # decoder MLP: Linear(E, L) -> ReLU -> Linear(L, C)
    hidden = jnp.dot(mean_t, w1_ref[...],
                     preferred_element_type=jnp.float32) + b1_ref[...]  # (bm, L)
    hidden = jnp.maximum(hidden, 0.0)
    y = jnp.dot(hidden, w2_ref[...],
                preferred_element_type=jnp.float32) + b2_ref[...]       # (bm, C)
    out_ref[...] = y.astype(out_ref.dtype)


def simple_fld_forward(timesteps, X, M, y_times, params):
    """Mirrors SimpleFLD.forward with residual_cycle=False."""
    del M  # unused in the residual_cycle=False path (parity with PyTorch)
    B, T = timesteps.shape
    _, _, C = X.shape
    T_out = y_times.shape[1]

    tw, tb = params["time_w"], params["time_b"]            # (1, E) each
    ce = params["channel_embed"]                           # (C, E)
    w1, b1 = params["w1"], params["b1"]                    # (E, L), (1, L)
    w2, b2 = params["w2"], params["b2"]                    # (L, C), (1, C)
    E = tw.shape[1]
    L = w1.shape[1]

    # Hoist the channel-embed contribution into the first-layer bias (exact
    # algebraic identity; only fp-reassociation differences).
    mean_c = jnp.mean(ce, axis=0, keepdims=True)           # (1, E)
    b1p = mean_c @ w1 + b1                                  # (1, L)

    # Pack time_linear weight + bias into one buffer -> one fewer input ref.
    tp = jnp.concatenate([tw, tb], axis=0)                  # (2, E)

    bm = min(B, 128)                                        # MXU-aligned batch tile
    grid = (pl.cdiv(B, bm),)

    y = pl.pallas_call(
        fld_kernel,
        out_shape=jax.ShapeDtypeStruct((B, C), jnp.float32),
        grid=grid,
        in_specs=[
            pl.BlockSpec((bm, T), lambda i: (i, 0)),        # timesteps tile
            pl.BlockSpec((2, E), lambda i: (0, 0)),         # packed time params
            pl.BlockSpec((E, L), lambda i: (0, 0)),         # w1 (resident)
            pl.BlockSpec((1, L), lambda i: (0, 0)),         # b1' (resident)
            pl.BlockSpec((L, C), lambda i: (0, 0)),         # w2 (resident)
            pl.BlockSpec((1, C), lambda i: (0, 0)),         # b2 (resident)
        ],
        out_specs=pl.BlockSpec((bm, C), lambda i: (i, 0)),
        compiler_params=pltpu.CompilerParams(
            dimension_semantics=("parallel",)),
    )(timesteps, tp, w1, b1p, w2, b2)

    # Forecast-horizon broadcast stays outside the kernel (no redundant HBM
    # writes from inside the pallas_call).
    return jnp.broadcast_to(y[:, None, :], (B, T_out, C))


def reference_forward(timesteps, X, M, y_times, params):
    """Pure-JAX transcription of the PyTorch forward (residual_cycle=False)."""
    B, T, C = X.shape
    E = params["time_w"].shape[1]
    e_lin = timesteps[:, :, None] * params["time_w"][0][None, None, :] \
        + params["time_b"][0][None, None, :]
    Et = (e_lin + jnp.sin(e_lin))[:, :, None, :]                 # (B,T,1,E)
    Et = jnp.broadcast_to(Et, (B, T, C, E))
    Ec = jnp.broadcast_to(params["channel_embed"][None, None], (B, T, C, E))
    E_all = Et + Ec
    E_seq = E_all.reshape(B, T * C, E)
    pooled = jnp.mean(E_seq, axis=1)                             # (B, E)
    h = jnp.maximum(pooled @ params["w1"] + params["b1"][0], 0.0)
    y = h @ params["w2"] + params["b2"][0]                       # (B, C)
    return jnp.broadcast_to(y[:, None, :], (B, y_times.shape[1], C))


def init_params(key, input_dim, latent_dim, embed_dim):
    ks = jax.random.split(key, 7)
    scale = 0.1
    return {
        # time_linear: nn.Linear(1, embed_dim) -> weight (E,1) squeezed, bias (E,)
        "time_w": scale * jax.random.normal(ks[0], (1, embed_dim), jnp.float32),
        "time_b": scale * jax.random.normal(ks[1], (1, embed_dim), jnp.float32),
        # channel_embed: (input_dim, embed_dim)
        "channel_embed": jax.random.normal(ks[2], (input_dim, embed_dim),
                                           jnp.float32),
        # decoder[0]: Linear(embed_dim, latent_dim), stored as (E, L)
        "w1": scale * jax.random.normal(ks[3], (embed_dim, latent_dim),
                                        jnp.float32),
        "b1": scale * jax.random.normal(ks[4], (1, latent_dim), jnp.float32),
        # decoder[2]: Linear(latent_dim, input_dim), stored as (L, C)
        "w2": scale * jax.random.normal(ks[5], (latent_dim, input_dim),
                                        jnp.float32),
        "b2": scale * jax.random.normal(ks[6], (1, input_dim), jnp.float32),
    }


if __name__ == "__main__":
    B, T, C = 2, 8, 4           # batch, in-sequence length, input_dim (channels)
    E, L = 32, 16               # embed_dim, latent_dim
    T_out = 6                   # forecast horizon (y_times length)

    key = jax.random.PRNGKey(0)
    k_p, k_t, k_x, k_y = jax.random.split(key, 4)

    params = init_params(k_p, input_dim=C, latent_dim=L, embed_dim=E)

    timesteps = jnp.cumsum(
        jax.random.uniform(k_t, (B, T), jnp.float32, 0.5, 1.5), axis=1)
    X = jax.random.normal(k_x, (B, T, C), jnp.float32)
    M = jnp.ones((B, T, C), jnp.float32)
    y_times = timesteps[:, -1:] + jnp.cumsum(
        jax.random.uniform(k_y, (B, T_out), jnp.float32, 0.5, 1.5), axis=1)

    out = simple_fld_forward(timesteps, X, M, y_times, params)
    out = jax.block_until_ready(out)

    ref = reference_forward(timesteps, X, M, y_times, params)
    assert out.shape == (B, T_out, C)
    assert jnp.allclose(out, ref, atol=1e-5, rtol=1e-5), "mismatch vs reference"

    print("KERNEL_OK")
</pallas_src>

<mosaic_0001>
module attributes {stable_mosaic.version = 11 : i64} {
  func.func @fld_kernel(%arg0: i32, %arg1: memref<2x8xf32, #tpu.memory_space<vmem>>, %arg2: memref<2x32xf32, #tpu.memory_space<vmem>>, %arg3: memref<32x16xf32, #tpu.memory_space<vmem>>, %arg4: memref<1x16xf32, #tpu.memory_space<vmem>>, %arg5: memref<16x4xf32, #tpu.memory_space<vmem>>, %arg6: memref<1x4xf32, #tpu.memory_space<vmem>>, %arg7: memref<2x4xf32, #tpu.memory_space<vmem>>) attributes {dimension_semantics = [#tpu.dimension_semantics<parallel>], iteration_bounds = array<i64: 1>, scalar_prefetch = 0 : i64, scratch_operands = 0 : i64, tpu.core_type = #tpu.core_type<tc>, window_params = [{transform_indices = @transform_0, window_bounds = array<i64: 2, 8>}, {pipeline_mode = #tpu.pipeline_mode<synchronous>, transform_indices = @transform_1, window_bounds = array<i64: 2, 32>}, {pipeline_mode = #tpu.pipeline_mode<synchronous>, transform_indices = @transform_2, window_bounds = array<i64: 32, 16>}, {pipeline_mode = #tpu.pipeline_mode<synchronous>, transform_indices = @transform_3, window_bounds = array<i64: 1, 16>}, {pipeline_mode = #tpu.pipeline_mode<synchronous>, transform_indices = @transform_4, window_bounds = array<i64: 16, 4>}, {pipeline_mode = #tpu.pipeline_mode<synchronous>, transform_indices = @transform_5, window_bounds = array<i64: 1, 4>}, {transform_indices = @transform_6, window_bounds = array<i64: 2, 4>}]} {
    %c0 = arith.constant 0 : index
    %c0_0 = arith.constant 0 : index
    %0 = vector.load %arg1[%c0, %c0_0] : memref<2x8xf32, #tpu.memory_space<vmem>>, vector<2x8xf32>
    %c0_1 = arith.constant 0 : index
    %c0_2 = arith.constant 0 : index
    %1 = vector.load %arg2[%c0_1, %c0_2] : memref<2x32xf32, #tpu.memory_space<vmem>>, vector<2x32xf32>
    %2 = vector.extract_strided_slice %1 {offsets = [0, 0], sizes = [1, 32], strides = [1, 1]} : vector<2x32xf32> to vector<1x32xf32>
    %3 = vector.extract_strided_slice %1 {offsets = [1, 0], sizes = [1, 32], strides = [1, 1]} : vector<2x32xf32> to vector<1x32xf32>
    %4 = vector.shape_cast %0 : vector<2x8xf32> to vector<2x8x1xf32>
    %5 = vector.shape_cast %2 : vector<1x32xf32> to vector<1x1x32xf32>
    %6 = vector.broadcast %4 : vector<2x8x1xf32> to vector<2x8x32xf32>
    %7 = vector.broadcast %5 : vector<1x1x32xf32> to vector<2x8x32xf32>
    %8 = arith.mulf %6, %7 : vector<2x8x32xf32>
    %9 = vector.shape_cast %3 : vector<1x32xf32> to vector<1x1x32xf32>
    %10 = vector.broadcast %9 : vector<1x1x32xf32> to vector<2x8x32xf32>
    %11 = arith.addf %8, %10 : vector<2x8x32xf32>
    %12 = math.sin %11 : vector<2x8x32xf32>
    %13 = arith.addf %11, %12 : vector<2x8x32xf32>
    %cst = arith.constant dense<0.000000e+00> : vector<2x32xf32>
    %14 = vector.multi_reduction <add>, %13, %cst [1] : vector<2x8x32xf32> to vector<2x32xf32>
    %cst_3 = arith.constant 8.000000e+00 : f32
    %15 = vector.broadcast %cst_3 : f32 to vector<2x32xf32>
    %16 = arith.divf %14, %15 : vector<2x32xf32>
    %c0_4 = arith.constant 0 : index
    %c0_5 = arith.constant 0 : index
    %17 = vector.load %arg3[%c0_4, %c0_5] : memref<32x16xf32, #tpu.memory_space<vmem>>, vector<32x16xf32>
    %cst_6 = arith.constant dense<0.000000e+00> : vector<2x16xf32>
    %18 = tpu.matmul %16, %17, %cst_6 {dimension_numbers = #tpu.dot_dimension_numbers<[1], [0], [0], [1], [0, 0, 1, 1], [], []>} : vector<2x32xf32>, vector<32x16xf32>, vector<2x16xf32> -> vector<2x16xf32>
    %c0_7 = arith.constant 0 : index
    %c0_8 = arith.constant 0 : index
    %19 = vector.load %arg4[%c0_7, %c0_8] : memref<1x16xf32, #tpu.memory_space<vmem>>, vector<1x16xf32>
    %20 = vector.broadcast %19 : vector<1x16xf32> to vector<2x16xf32>
    %21 = arith.addf %18, %20 : vector<2x16xf32>
    %cst_9 = arith.constant 0.000000e+00 : f32
    %22 = vector.broadcast %cst_9 : f32 to vector<2x16xf32>
    %23 = arith.maximumf %21, %22 : vector<2x16xf32>
    %c0_10 = arith.constant 0 : index
    %c0_11 = arith.constant 0 : index
    %24 = vector.load %arg5[%c0_10, %c0_11] : memref<16x4xf32, #tpu.memory_space<vmem>>, vector<16x4xf32>
    %cst_12 = arith.constant dense<0.000000e+00> : vector<2x4xf32>
    %25 = tpu.matmul %23, %24, %cst_12 {dimension_numbers = #tpu.dot_dimension_numbers<[1], [0], [0], [1], [0, 0, 1, 1], [], []>} : vector<2x16xf32>, vector<16x4xf32>, vector<2x4xf32> -> vector<2x4xf32>
    %c0_13 = arith.constant 0 : index
    %c0_14 = arith.constant 0 : index
    %26 = vector.load %arg6[%c0_13, %c0_14] : memref<1x4xf32, #tpu.memory_space<vmem>>, vector<1x4xf32>
    %27 = vector.broadcast %26 : vector<1x4xf32> to vector<2x4xf32>
    %28 = arith.addf %25, %27 : vector<2x4xf32>
    %c0_15 = arith.constant 0 : index
    %c0_16 = arith.constant 0 : index
    %29 = vector.load %arg7[%c0_15, %c0_16] : memref<2x4xf32, #tpu.memory_space<vmem>>, vector<2x4xf32>
    tpu.vector_store %arg7[%c0_15, %c0_16], %28 {strides = array<i32>} : memref<2x4xf32, #tpu.memory_space<vmem>>, vector<2x4xf32>,
    return
  }
  func.func @transform_0(%arg0: i32) -> (i32, i32) {
    %c0_i32 = arith.constant 0 : i32
    %c0_i32_0 = arith.constant 0 : i32
    return %arg0, %c0_i32 : i32, i32
  }
  func.func @transform_1(%arg0: i32) -> (i32, i32) {
    %c0_i32 = arith.constant 0 : i32
    %c0_i32_0 = arith.constant 0 : i32
    %c0_i32_1 = arith.constant 0 : i32
    return %c0_i32, %c0_i32_0 : i32, i32
  }
  func.func @transform_2(%arg0: i32) -> (i32, i32) {
    %c0_i32 = arith.constant 0 : i32
    %c0_i32_0 = arith.constant 0 : i32
    %c0_i32_1 = arith.constant 0 : i32
    return %c0_i32, %c0_i32_0 : i32, i32
  }
  func.func @transform_3(%arg0: i32) -> (i32, i32) {
    %c0_i32 = arith.constant 0 : i32
    %c0_i32_0 = arith.constant 0 : i32
    %c0_i32_1 = arith.constant 0 : i32
    return %c0_i32, %c0_i32_0 : i32, i32
  }
  func.func @transform_4(%arg0: i32) -> (i32, i32) {
    %c0_i32 = arith.constant 0 : i32
    %c0_i32_0 = arith.constant 0 : i32
    %c0_i32_1 = arith.constant 0 : i32
    return %c0_i32, %c0_i32_0 : i32, i32
  }
  func.func @transform_5(%arg0: i32) -> (i32, i32) {
    %c0_i32 = arith.constant 0 : i32
    %c0_i32_0 = arith.constant 0 : i32
    %c0_i32_1 = arith.constant 0 : i32
    return %c0_i32, %c0_i32_0 : i32, i32
  }
  func.func @transform_6(%arg0: i32) -> (i32, i32) {
    %c0_i32 = arith.constant 0 : i32
    %c0_i32_0 = arith.constant 0 : i32
    return %arg0, %c0_i32 : i32, i32
  }
}

</mosaic_0001>

<llo_original>
// kernel: tpu_custom_call.1
$region0: #{tpu_custom_call.1}
  #allocation0 [shape = 'u32[]', space=smem, size = 0x4, offset = 0x4, fixed_abs, tag = 'smem constant byte address 0x4 - core index']
  #allocation1 [shape = 'u32[144,128]{1,0:T(1,128)}', space=vmem, size = 0x12000, scoped, tag = 'internal scratch']
  %s0 = inlined_call_operand.vmem [shape: f32[2,8], index: 0, kind: input, shape index: {}]
  %s1 = inlined_call_operand.vmem [shape: f32[2,32], index: 1, kind: input, shape index: {}]
  %s2 = inlined_call_operand.vmem [shape: f32[32,16], index: 2, kind: input, shape index: {}]
  %s3 = inlined_call_operand.vmem [shape: f32[1,16], index: 3, kind: input, shape index: {}]
  %s4 = inlined_call_operand.vmem [shape: f32[16,4], index: 4, kind: input, shape index: {}]
  %s5 = inlined_call_operand.vmem [shape: f32[1,4], index: 5, kind: input, shape index: {}]
  %s6 = inlined_call_operand.hbm [shape: f32[2,4], index: 6, kind: output, shape index: {}]
  %s7 = sld [smem:[#allocation0]]
  $region34: #{tpu_custom_call.1} parent=0
    _
  %s9 = ssub.s32 1, %s7
  %s10 = scalar_select 0, %s9, %s7
  $region1: #{tpu_custom_call.1} parent=0
    #allocation2 [shape = 'u8[1024]{0}', space=vmem, size = 0x400, scoped, tag = 'output window, operand 0, single buffered']
    #allocation3 [shape = 's32[1]{0}', space=sflag, size = 0x4, scoped, tag = 'scoped memory for tpu_custom_call.1']
    %11 = vsyncpa [#allocation3], 0
    // Predicated region
    $region2: #{tpu_custom_call.1} parent=1 // pred_check
      _
    $region3: #{tpu_custom_call.1} parent=1 // pred_check_branch
      %13 = sbr.rel (0) target = $region5
    $region4: #{tpu_custom_call.1} parent=1 // pred_region
      _
    $region5: #{tpu_custom_call.1} parent=1 // pred_fallthru
      _
    // Predicated region
    $region6: #{tpu_custom_call.1} parent=1 // pred_check
      _
    $region7: #{tpu_custom_call.1} parent=1 // pred_check_branch
      %15 = sbr.rel (0) target = $region9
    $region8: #{tpu_custom_call.1} parent=1 // pred_region
      _
    $region9: #{tpu_custom_call.1} parent=1 // pred_fallthru
      _
    // Predicated region
    $region10: #{tpu_custom_call.1} parent=1 // pred_check
      _
    $region11: #{tpu_custom_call.1} parent=1 // pred_check_branch
      %17 = sbr.rel (0) target = $region13
    $region12: #{tpu_custom_call.1} parent=1 // pred_region
      _
    $region13: #{tpu_custom_call.1} parent=1 // pred_fallthru
      _
    // Predicated region
    $region14: #{tpu_custom_call.1} parent=1 // pred_check
      _
    $region15: #{tpu_custom_call.1} parent=1 // pred_check_branch
      %19 = sbr.rel (0) target = $region17
    $region16: #{tpu_custom_call.1} parent=1 // pred_region
      _
    $region17: #{tpu_custom_call.1} parent=1 // pred_fallthru
      _
    // Predicated region
    $region18: #{tpu_custom_call.1} parent=1 // pred_check
      _
    $region19: #{tpu_custom_call.1} parent=1 // pred_check_branch
      %21 = sbr.rel (0) target = $region21
    $region20: #{tpu_custom_call.1} parent=1 // pred_region
      _
    $region21: #{tpu_custom_call.1} parent=1 // pred_fallthru
      _
    // Predicated region
    $region22: #{tpu_custom_call.1} parent=1 // pred_check
      _
    $region23: #{tpu_custom_call.1} parent=1 // pred_check_branch
      %23 = sbr.rel (0) target = $region25
    $region24: #{tpu_custom_call.1} parent=1 // pred_region
      _
    $region25: #{tpu_custom_call.1} parent=1 // pred_fallthru
      _
    %v24 = vld [vmem:[%s0] sm:$0x3]
    %v25 = vld [vmem:[%s1] sm:$0x3]
    %v26 = vlaneseq
    %v27 = vshrl.u32 %v26, 7
    %v28 = vsub.s32 0, %v27
    %v29 = vrot.slane %v24, %v28
    %31 = vbcast.lane.b32.xlu0 %v29, 256
    %v32 = vpop.permute.xlu0 %31
    %v33 = vlaneseq
    %v34 = vshrl.u32 %v33, 7
    %v35 = vsub.s32 1, %v34
    %v36 = vrot.slane %v24, %v35
    %38 = vbcast.lane.b32.xlu0 %v36, 256
    %v39 = vpop.permute.xlu0 %38
    %v40 = vlaneseq
    %v41 = vshrl.u32 %v40, 7
    %v42 = vsub.s32 0, %v41
    %v43 = vrot.slane %v25, %v42
    %v44 = vmul.f32 %v32, %v43
    %v45 = vmul.f32 %v39, %v43
    %v46 = vlaneseq
    %v47 = vshrl.u32 %v46, 7
    %v48 = vsub.s32 1, %v47
    %v49 = vrot.slane %v25, %v48
    %v50 = vadd.f32 %v44, %v49
    %v51 = vadd.f32 %v45, %v49
    %v52 = vand.u32 2147483647, %v50
    %vm53 = vcmp.le.f32.partialorder %v52, 0.7853982
    %vm54 = vcmp.lt.s32.totalorder %v50, 0
    %v55 = vand.u32 %v50, 2139095040
    %v56 = vshrl.u32 %v55, 23
    %v57 = vsub.s32 %v56, 127
    %v58 = vand.u32 2147483647, %v50
    %v59 = vand.u32 %v58, 8388607
    %v60 = vor.u32 %v59, 8388608
    %v61 = vsub.s32 0, %v60
    %v62 = vadd.s32 %v57, 1
    %vm63 = vcmp.gt.s32.totalorder %v62, 0
    %v64 = vsel %vm63, %v62, 0
    %v65 = vshrl.u32 %v64, 5
    %v66 = vand.u32 %v64, 31
    %v67 = vsub.s32 32, %v66
    %v68 = vshrl.u32 683565275, %v67
    %v69 = vshll.u32 683565275, %v66
    %v70 = vshrl.u32 2475754826, %v67
    %v71 = vor.u32 %v69, %v70
    %v72 = vshll.u32 2475754826, %v66
    %v73 = vshrl.u32 2131351028, %v67
    %v74 = vor.u32 %v72, %v73
    %v75 = vshll.u32 2131351028, %v66
    %v76 = vshrl.u32 2102212464, %v67
    %v77 = vor.u32 %v75, %v76
    %v78 = vshll.u32 2102212464, %v66
    %v79 = vshrl.u32 920167782, %v67
    %v80 = vor.u32 %v78, %v79
    %v81 = vshll.u32 920167782, %v66
    %v82 = vshrl.u32 1326507024, %v67
    %v83 = vor.u32 %v81, %v82
    %vm84 = vcmp.lt.s32.totalorder %v65, 1
    %vm85 = vcmp.lt.s32.totalorder %v65, 2
    %vm86 = vcmp.lt.s32.totalorder %v65, 3
    %vm87 = vcmp.lt.s32.totalorder %v65, 4
    %v88 = vsel %vm84, %v68, %v71
    %v89 = vsel %vm87, %v77, 2102212464
    %v90 = vsel %vm86, %v74, %v89
    %v91 = vsel %vm85, %v88, %v90
    %v92 = vsel %vm84, %v71, %v74
    %v93 = vsel %vm87, %v80, 920167782
    %v94 = vsel %vm86, %v77, %v93
    %v95 = vsel %vm85, %v92, %v94
    %v96 = vsel %vm84, %v74, %v77
    %v97 = vsel %vm87, %v83, 1326507024
    %v98 = vsel %vm86, %v80, %v97
    %v99 = vsel %vm85, %v96, %v98
    %v100 = vshll.u32 %v60, 8
    %v101 = vmul.u32.u64.compose %v100, %v99
    %v102 = vextract.low.u32 %v101
    %v103 = vextract.high.u32 %v101
    %v104 = vmul.u32.u64.compose %v100, %v95
    %v105 = vextract.low.u32 %v104
    %v106 = vextract.high.u32 %v104
    %v107 = vmul.u32 %v100, %v91
    %v108 = vadd.s32 %v103, %v105
    %vm109 = vc.u32 %v103, %v105
    %v110 = vadd.s32 %v106, 1
    %v111 = vsel %vm109, %v110, %v106
    %v112 = vadd.s32 %v107, %v111
    %v113 = vadd.s32 %v112, 536870912
    %v114 = vshrl.u32 %v113, 30
    %v115 = vshll.u32 %v114, 30
    %v116 = vsub.s32 %v112, %v115
    %vm117 = vcmp.lt.s32.totalorder %v116, 0
    %v118 = vsub.s32 0, %v116
    %v119 = vsel %vm117, %v118, %v116
    %v120 = vclz %v119
    %v121 = vsub.s32 %v120, 2
    %vm122 = vcmp.gt.s32.totalorder 0, %v121
    %v123 = vsel %vm122, 0, %v121
    %v124 = vsub.s32 32, %v123
    %v125 = vshll.u32 %v116, %v123
    %v126 = vshrl.u32 %v108, %v124
    %v127 = vor.u32 %v125, %v126
    %v128 = vsub.s32 4294967266, %v123
    %v129 = vadd.s32 %v128, 127
    %v130 = vshll.u32 %v129, 23
    %v131 = vor.u32 4788187, %v130
    %v132 = vand.u32 2147483647, %v131
    %v134 = vcvt.s32.f32 %v127
    %v135 = vmul.f32 %v134, %v132
    %v136 = vxor.u32 %v135, 2147483648
    %v137 = vsel %vm54, %v136, %v135
    %v138 = vsub.s32 4, %v114
    %v139 = vsel %vm54, %v138, %v114
    %v140 = vsel %vm53, %v50, %v137
    %v141 = vsel %vm53, 0, %v139
    %v142 = vcosq.f32.pop %v140
    %v143 = vsinq.f32.pop %v140
    %vm144 = vweird.f32 %v50
    %v145 = vadd.s32 %v141, 3
    %v146 = vand.u32 %v145, 3
    %vm147 = vcmp.lt.s32.totalorder %v146, 2
    %vm148 = vcmp.eq.s32.totalorder %v146, 0
    %v149 = vxor.u32 %v143, 2147483648
    %v150 = vsel %vm148, %v142, %v149
    %vm151 = vcmp.eq.s32.totalorder %v146, 2
    %v152 = vxor.u32 %v142, 2147483648
    %v153 = vsel %vm151, %v152, %v143
    %v154 = vsel %vm147, %v150, %v153
    %v155 = vsel %vm144, nan, %v154
    %v156 = vand.u32 2147483647, %v51
    %vm157 = vcmp.le.f32.partialorder %v156, 0.7853982
    %vm158 = vcmp.lt.s32.totalorder %v51, 0
    %v159 = vand.u32 %v51, 2139095040
    %v160 = vshrl.u32 %v159, 23
    %v161 = vsub.s32 %v160, 127
    %v162 = vand.u32 2147483647, %v51
    %v163 = vand.u32 %v162, 8388607
    %v164 = vor.u32 %v163, 8388608
    %v165 = vsub.s32 0, %v164
    %v166 = vadd.s32 %v161, 1
    %vm167 = vcmp.gt.s32.totalorder %v166, 0
    %v168 = vsel %vm167, %v166, 0
    %v169 = vshrl.u32 %v168, 5
    %v170 = vand.u32 %v168, 31
    %v171 = vsub.s32 32, %v170
    %v172 = vshrl.u32 683565275, %v171
    %v173 = vshll.u32 683565275, %v170
    %v174 = vshrl.u32 2475754826, %v171
    %v175 = vor.u32 %v173, %v174
    %v176 = vshll.u32 2475754826, %v170
    %v177 = vshrl.u32 2131351028, %v171
    %v178 = vor.u32 %v176, %v177
    %v179 = vshll.u32 2131351028, %v170
    %v180 = vshrl.u32 2102212464, %v171
    %v181 = vor.u32 %v179, %v180
    %v182 = vshll.u32 2102212464, %v170
    %v183 = vshrl.u32 920167782, %v171
    %v184 = vor.u32 %v182, %v183
    %v185 = vshll.u32 920167782, %v170
    %v186 = vshrl.u32 1326507024, %v171
    %v187 = vor.u32 %v185, %v186
    %vm188 = vcmp.lt.s32.totalorder %v169, 1
    %vm189 = vcmp.lt.s32.totalorder %v169, 2
    %vm190 = vcmp.lt.s32.totalorder %v169, 3
    %vm191 = vcmp.lt.s32.totalorder %v169, 4
    %v192 = vsel %vm188, %v172, %v175
    %v193 = vsel %vm191, %v181, 2102212464
    %v194 = vsel %vm190, %v178, %v193
    %v195 = vsel %vm189, %v192, %v194
    %v196 = vsel %vm188, %v175, %v178
    %v197 = vsel %vm191, %v184, 920167782
    %v198 = vsel %vm190, %v181, %v197
    %v199 = vsel %vm189, %v196, %v198
    %v200 = vsel %vm188, %v178, %v181
    %v201 = vsel %vm191, %v187, 1326507024
    %v202 = vsel %vm190, %v184, %v201
    %v203 = vsel %vm189, %v200, %v202
    %v204 = vshll.u32 %v164, 8
    %v205 = vmul.u32.u64.compose %v204, %v203
    %v206 = vextract.low.u32 %v205
    %v207 = vextract.high.u32 %v205
    %v208 = vmul.u32.u64.compose %v204, %v199
    %v209 = vextract.low.u32 %v208
    %v210 = vextract.high.u32 %v208
    %v211 = vmul.u32 %v204, %v195
    %v212 = vadd.s32 %v207, %v209
    %vm213 = vc.u32 %v207, %v209
    %v214 = vadd.s32 %v210, 1
    %v215 = vsel %vm213, %v214, %v210
    %v216 = vadd.s32 %v211, %v215
    %v217 = vadd.s32 %v216, 536870912
    %v218 = vshrl.u32 %v217, 30
    %v219 = vshll.u32 %v218, 30
    %v220 = vsub.s32 %v216, %v219
    %vm221 = vcmp.lt.s32.totalorder %v220, 0
    %v222 = vsub.s32 0, %v220
    %v223 = vsel %vm221, %v222, %v220
    %v224 = vclz %v223
    %v225 = vsub.s32 %v224, 2
    %vm226 = vcmp.gt.s32.totalorder 0, %v225
    %v227 = vsel %vm226, 0, %v225
    %v228 = vsub.s32 32, %v227
    %v229 = vshll.u32 %v220, %v227
    %v230 = vshrl.u32 %v212, %v228
    %v231 = vor.u32 %v229, %v230
    %v232 = vsub.s32 4294967266, %v227
    %v233 = vadd.s32 %v232, 127
    %v234 = vshll.u32 %v233, 23
    %v235 = vor.u32 4788187, %v234
    %v236 = vand.u32 2147483647, %v235
    %v238 = vcvt.s32.f32 %v231
    %v239 = vmul.f32 %v238, %v236
    %v240 = vxor.u32 %v239, 2147483648
    %v241 = vsel %vm158, %v240, %v239
    %v242 = vsub.s32 4, %v218
    %v243 = vsel %vm158, %v242, %v218
    %v244 = vsel %vm157, %v51, %v241
    %v245 = vsel %vm157, 0, %v243
    %v246 = vcosq.f32.pop %v244
    %v247 = vsinq.f32.pop %v244
    %vm248 = vweird.f32 %v51
    %v249 = vadd.s32 %v245, 3
    %v250 = vand.u32 %v249, 3
    %vm251 = vcmp.lt.s32.totalorder %v250, 2
    %vm252 = vcmp.eq.s32.totalorder %v250, 0
    %v253 = vxor.u32 %v247, 2147483648
    %v254 = vsel %vm252, %v246, %v253
    %vm255 = vcmp.eq.s32.totalorder %v250, 2
    %v256 = vxor.u32 %v246, 2147483648
    %v257 = vsel %vm255, %v256, %v247
    %v258 = vsel %vm251, %v254, %v257
    %v259 = vsel %vm248, nan, %v258
    %v260 = vadd.f32 %v50, %v155
    %v261 = vadd.f32 %v51, %v259
    %vm262 = vcmask 261120
    %v263 = vsel %vm262, %v260, 0.0
    %v264 = vrot.slane %v263, 4
    %v265 = vadd.f32 %v263, %v264
    %v266 = vrot.slane %v265, 2
    %v267 = vadd.f32 %v265, %v266
    %v268 = vrot.slane %v267, 1
    %v269 = vadd.f32 %v267, %v268
    %v270 = vsel %vm262, %v261, 0.0
    %v271 = vrot.slane %v270, 4
    %v272 = vadd.f32 %v270, %v271
    %v273 = vrot.slane %v272, 2
    %v274 = vadd.f32 %v272, %v273
    %v275 = vrot.slane %v274, 1
    %v276 = vadd.f32 %v274, %v275
    %v277 = vrcp.pop 8.0
    %v278 = vmul.f32 %v269, %v277
    %v279 = vmul.f32 %v276, %v277
    %v280 = vld [vmem:[%s2] sm:$0xff]
    %v281 = vld [vmem:[%s2 + $0x8] sm:$0xff]
    %v282 = vld [vmem:[%s2 + $0x10] sm:$0xff]
    %v283 = vld [vmem:[%s2 + $0x18] sm:$0xff]
    %v284 = vld [vmem:[%s3] sm:$0x1]
    %v286 = vlaneseq
    %v287 = vshrl.u32 %v286, 7
    %v288 = vsub.s32 0, %v287
    %v289 = vrot.slane %v284, %v288
    %vm293 = vcmask 1041409
    %v294 = vsel %vm293, %v279, %v278
    %v295 = vsel %vm262, %v294, 0
    %297 = vmatprep.subr.mxu0 0.0
    %298 = vmatpush1.msra.mxu0 %v280
    %299 = vmatprep.subr.mxu0 0.0
    %300 = vmatpush1.msra.mxu0 %v281
    %301 = vmatprep.subr.mxu0 0.0
    %302 = vmatpush1.msra.mxu0 %v282
    %303 = vmatprep.subr.mxu0 0.0
    %304 = vmatpush1.msra.mxu0 %v283
    %305 = vmatprep.subr.mxu0 0.0
    %306 = vmatpush1.msra.mxu0 0.0
    %307 = vmatprep.subr.mxu0 0.0
    %308 = vmatpush1.msra.mxu0 0.0
    %309 = vmatprep.subr.mxu0 0.0
    %310 = vmatpush1.msra.mxu0 0.0
    %311 = vmatprep.subr.mxu0 0.0
    %312 = vmatpush1.msra.mxu0 0.0
    %313 = vmatprep.subr.mxu0 0.0
    %314 = vmatpush1.msra.mxu0 0.0
    %315 = vmatprep.subr.mxu0 0.0
    %316 = vmatpush1.msra.mxu0 0.0
    %317 = vmatprep.subr.mxu0 0.0
    %318 = vmatpush1.msra.mxu0 0.0
    %319 = vmatprep.subr.mxu0 0.0
    %320 = vmatpush1.msra.mxu0 0.0
    %321 = vmatprep.subr.mxu0 0.0
    %322 = vmatpush1.msra.mxu0 0.0
    %323 = vmatprep.subr.mxu0 0.0
    %324 = vmatpush1.msra.mxu0 0.0
    %325 = vmatprep.subr.mxu0 0.0
    %326 = vmatpush1.msra.mxu0 0.0
    %327 = vmatprep.subr.mxu0 0.0
    %328 = vmatpush1.msra.mxu0 0.0
    %329 = vmatprep.subr.mxu0 0.0
    %330 = vmatpush1.msra.mxu0 0.0
    %331 = vmatprep.subr.mxu0 0.0
    %332 = vmatpush1.msra.mxu0 0.0
    %333 = vmatprep.subr.mxu0 0.0
    %334 = vmatpush1.msra.mxu0 0.0
    %335 = vmatprep.subr.mxu0 0.0
    %336 = vmatpush1.msra.mxu0 0.0
    %337 = vmatprep.subr.mxu0 0.0
    %338 = vmatpush1.msra.mxu0 0.0
    %339 = vmatprep.subr.mxu0 0.0
    %340 = vmatpush1.msra.mxu0 0.0
    %341 = vmatprep.subr.mxu0 0.0
    %342 = vmatpush1.msra.mxu0 0.0
    %343 = vmatprep.subr.mxu0 0.0
    %344 = vmatpush1.msra.mxu0 0.0
    %345 = vmatprep.subr.mxu0 0.0
    %346 = vmatpush1.msra.mxu0 0.0
    %347 = vmatprep.subr.mxu0 0.0
    %348 = vmatpush1.msra.mxu0 0.0
    %349 = vmatprep.subr.mxu0 0.0
    %350 = vmatpush1.msra.mxu0 0.0
    %351 = vmatprep.subr.mxu0 0.0
    %352 = vmatpush1.msra.mxu0 0.0
    %353 = vmatprep.subr.mxu0 0.0
    %354 = vmatpush1.msra.mxu0 0.0
    %355 = vmatprep.subr.mxu0 0.0
    %356 = vmatpush1.msra.mxu0 0.0
    %357 = vmatprep.subr.mxu0 0.0
    %358 = vmatpush1.msra.mxu0 0.0
    %359 = vmatprep.subr.mxu0 0.0
    %360 = vmatpush1.msra.mxu0 0.0
    %361 = vmatprep.mubr.f32.mxu0 0.0
    %362 = vmatmul.mubr.f32.gmra.mrb[0].mxu0 %v295
    %v363 = vpop.f32.mrb[0].mxu0
    %v364 = vadd.f32 %v289, %v363
    %v365 = vpop.f32.mrb[0].mxu0
    %366 = vdwg.mxu0
    %v367 = vmax.f32 %v364, 0.0
    %v368 = vld [vmem:[%s4] sm:$0xff]
    %v369 = vld [vmem:[%s4 + $0x8] sm:$0xff]
    %v370 = vld [vmem:[%s5] sm:$0x1]
    %v372 = vlaneseq
    %v373 = vshrl.u32 %v372, 7
    %v374 = vsub.s32 0, %v373
    %v375 = vrot.slane %v370, %v374
    %vm377 = vcmask 130048
    %v379 = vsel %vm377, %v367, 0
    %381 = vmatprep.subr.mxu0 0.0
    %382 = vmatpush1.msra.mxu0 %v368
    %383 = vmatprep.subr.mxu0 0.0
    %384 = vmatpush1.msra.mxu0 %v369
    %385 = vmatprep.subr.mxu0 0.0
    %386 = vmatpush1.msra.mxu0 0.0
    %387 = vmatprep.subr.mxu0 0.0
    %388 = vmatpush1.msra.mxu0 0.0
    %389 = vmatprep.subr.mxu0 0.0
    %390 = vmatpush1.msra.mxu0 0.0
    %391 = vmatprep.subr.mxu0 0.0
    %392 = vmatpush1.msra.mxu0 0.0
    %393 = vmatprep.subr.mxu0 0.0
    %394 = vmatpush1.msra.mxu0 0.0
    %395 = vmatprep.subr.mxu0 0.0
    %396 = vmatpush1.msra.mxu0 0.0
    %397 = vmatprep.subr.mxu0 0.0
    %398 = vmatpush1.msra.mxu0 0.0
    %399 = vmatprep.subr.mxu0 0.0
    %400 = vmatpush1.msra.mxu0 0.0
    %401 = vmatprep.subr.mxu0 0.0
    %402 = vmatpush1.msra.mxu0 0.0
    %403 = vmatprep.subr.mxu0 0.0
    %404 = vmatpush1.msra.mxu0 0.0
    %405 = vmatprep.subr.mxu0 0.0
    %406 = vmatpush1.msra.mxu0 0.0
    %407 = vmatprep.subr.mxu0 0.0
    %408 = vmatpush1.msra.mxu0 0.0
    %409 = vmatprep.subr.mxu0 0.0
    %410 = vmatpush1.msra.mxu0 0.0
    %411 = vmatprep.subr.mxu0 0.0
    %412 = vmatpush1.msra.mxu0 0.0
    %413 = vmatprep.subr.mxu0 0.0
    %414 = vmatpush1.msra.mxu0 0.0
    %415 = vmatprep.subr.mxu0 0.0
    %416 = vmatpush1.msra.mxu0 0.0
    %417 = vmatprep.subr.mxu0 0.0
    %418 = vmatpush1.msra.mxu0 0.0
    %419 = vmatprep.subr.mxu0 0.0
    %420 = vmatpush1.msra.mxu0 0.0
    %421 = vmatprep.subr.mxu0 0.0
    %422 = vmatpush1.msra.mxu0 0.0
    %423 = vmatprep.subr.mxu0 0.0
    %424 = vmatpush1.msra.mxu0 0.0
    %425 = vmatprep.subr.mxu0 0.0
    %426 = vmatpush1.msra.mxu0 0.0
    %427 = vmatprep.subr.mxu0 0.0
    %428 = vmatpush1.msra.mxu0 0.0
    %429 = vmatprep.subr.mxu0 0.0
    %430 = vmatpush1.msra.mxu0 0.0
    %431 = vmatprep.subr.mxu0 0.0
    %432 = vmatpush1.msra.mxu0 0.0
    %433 = vmatprep.subr.mxu0 0.0
    %434 = vmatpush1.msra.mxu0 0.0
    %435 = vmatprep.subr.mxu0 0.0
    %436 = vmatpush1.msra.mxu0 0.0
    %437 = vmatprep.subr.mxu0 0.0
    %438 = vmatpush1.msra.mxu0 0.0
    %439 = vmatprep.subr.mxu0 0.0
    %440 = vmatpush1.msra.mxu0 0.0
    %441 = vmatprep.subr.mxu0 0.0
    %442 = vmatpush1.msra.mxu0 0.0
    %443 = vmatprep.subr.mxu0 0.0
    %444 = vmatpush1.msra.mxu0 0.0
    %445 = vmatprep.mubr.f32.mxu0 0.0
    %446 = vmatmul.mubr.f32.gmra.mrb[0].mxu0 %v379
    %v447 = vpop.f32.mrb[0].mxu0
    %v448 = vadd.f32 %v375, %v447
    %v449 = vpop.f32.mrb[0].mxu0
    %450 = vdwg.mxu0
    %vm451 = vcmask 25600
    %452 = vst.msk [vmem:[#allocation2] sm:$0x3] %vm451, %v448
    // Predicated region
    $region26: #{tpu_custom_call.1} parent=1 // pred_check
      _
    $region27: #{tpu_custom_call.1} parent=1 // pred_check_branch
      %454 = sbr.rel (0) target = $region29
    $region28: #{tpu_custom_call.1} parent=1 // pred_region
      %s456 = ssub.s32 32, 32
      %457 = vsyncadd [#allocation3], %s456
      %s459 = sshll.u32 [#allocation2], 4
      %s460 = int_to_ptr.vmem [resolvable:$true] %s459
      %462 = dma.vmem_to_hbm [thread:$0]  %s460, 32, %s6, [#allocation3]
    $region29: #{tpu_custom_call.1} parent=1 // pred_fallthru
      _
    // Predicated region
    $region30: #{tpu_custom_call.1} parent=1 // pred_check
      _
    $region31: #{tpu_custom_call.1} parent=1 // pred_check_branch
      %464 = sbr.rel (0) target = $region33
    $region32: #{tpu_custom_call.1} parent=1 // pred_region
      %465 = dma.done [#allocation3], 32
    $region33: #{tpu_custom_call.1} parent=1 // pred_fallthru
      _
    %466 = vsyncpa [#allocation3], 1

</llo_original>
